<compile_context>
chip_gen: v6e
topology: v6e:2x2x1
jax: 0.10.0
libtpu: 0.0.40
codegen_flags: <defaults>
</compile_context>

<pallas_src>
import functools

import jax
import jax.numpy as jnp
from jax.experimental import pallas as pl
from jax.experimental.pallas import tpu as pltpu


def _round_up(x, m):
    return (x + m - 1) // m * m


def _conv2d_kernel(x_ref, w_ref, b_ref, o_ref, *,
                   n_batch, cin, kh_size, kw_size, w_img, slab):
    """VALID conv as Cin*KH*KW outer-product VPU FMAs over lane-contiguous taps.

    x_ref : (N*Cin, HW_pad)        flattened, right-padded image rows (lane axis)
    w_ref : (Cout_pad, Cin*KH*KW)  zero-padded, flattened OIHW weights
    b_ref : (Cout_pad, 1)          zero-padded bias
    o_ref : (N, Cout_pad, slab)    full-width-row output slab (slab >= Ho*W)
    """
    x = x_ref[...]                                   # whole input: a few vregs
    w = w_ref[...]
    cout_pad = w.shape[0]

    # Hoisted per-tap weight columns (JAX does not CSE slices/broadcasts).
    n_taps = cin * kh_size * kw_size
    w_cols = [w[:, t:t + 1] for t in range(n_taps)]  # each (Cout_pad, 1)

    # Bias folded into the accumulator init (one lane-broadcast, reused).
    acc_init = jnp.broadcast_to(b_ref[...], (cout_pad, slab)).astype(jnp.float32)
    accs = [acc_init for _ in range(n_batch)]

    for kh in range(kh_size):
        for kw in range(kw_size):
            off = kh * w_img + kw
            # One contiguous lane-shift slice per spatial tap offset, shared by
            # every (batch, channel) row -- no sublane->lane relayouts.
            tap_rows = x[:, off:off + slab]          # (N*Cin, slab)
            for ci in range(cin):
                t = (ci * kh_size + kh) * kw_size + kw
                for n in range(n_batch):
                    tap = tap_rows[n * cin + ci, :][None, :]   # (1, slab)
                    # (Cout_pad,1) * (1,slab) outer-product FMA on the VPU;
                    # replaces the <1%-utilised MXU push of the old version.
                    accs[n] = accs[n] + w_cols[t] * tap

    for n in range(n_batch):                          # full-vreg, unmasked stores
        o_ref[n] = accs[n].astype(o_ref.dtype)


@jax.jit
def tudui_forward(x_nchw, w_oihw, b):
    """Tudui.forward: y = Conv2d(3, 6, k=3, s=1, p=0)(x); NCHW in, NCHW out."""
    N, Cin, H, W = x_nchw.shape
    Cout, _, KH, KW = w_oihw.shape
    Ho, Wo = H - KH + 1, W - KW + 1

    # ---- layout prep (row-major reshapes / pads only; no transposes) ----
    slab = _round_up(Ho * W, 128)                 # full-width rows, lane-padded
    max_off = (KH - 1) * W + (KW - 1)             # largest tap offset
    hw_pad = _round_up(max_off + slab, 128)       # keep every tap slice in-bounds

    x_rows = x_nchw.reshape(N * Cin, H * W)       # one lane-dense row per plane
    x_rows = jnp.pad(x_rows, ((0, 0), (0, hw_pad - H * W)))

    cout_pad = _round_up(Cout, 8)                 # full-sublane stores / weights
    k_taps = Cin * KH * KW
    w_flat = w_oihw.reshape(Cout, k_taps)         # OIHW -> (Cout, Cin*KH*KW)
    w_pad = jnp.zeros((cout_pad, k_taps), w_flat.dtype).at[:Cout].set(w_flat)
    b_pad = jnp.zeros((cout_pad, 1), b.dtype).at[:Cout, 0].set(b)

    kernel = functools.partial(
        _conv2d_kernel, n_batch=N, cin=Cin, kh_size=KH, kw_size=KW,
        w_img=W, slab=slab)

    # Single grid step for the whole batch on every generation: the body is a
    # few hundred VPU ops, smaller than one grid step's pipeline overhead, and
    # total VMEM use is a few KB (fine even against v7x's 64 MiB VMEM).
    out = pl.pallas_call(
        kernel,
        out_shape=jax.ShapeDtypeStruct((N, cout_pad, slab), x_nchw.dtype),
        grid_spec=pltpu.PrefetchScalarGridSpec(
            num_scalar_prefetch=0,
            grid=(1,),
            in_specs=[
                pl.BlockSpec((N * Cin, hw_pad), lambda i: (0, 0)),
                pl.BlockSpec((cout_pad, k_taps), lambda i: (0, 0)),
                pl.BlockSpec((cout_pad, 1), lambda i: (0, 0)),
            ],
            out_specs=pl.BlockSpec((N, cout_pad, slab), lambda i: (0, 0, 0)),
        ),
        compiler_params=pltpu.CompilerParams(
            dimension_semantics=("arbitrary",)),
    )(x_rows, w_pad, b_pad)

    # Drop padded channels / pixels and the KW-1 garbage columns per row.
    return out[:, :Cout, :Ho * W].reshape(N, Cout, Ho, W)[..., :Wo]


if __name__ == "__main__":
    key = jax.random.PRNGKey(0)
    k_x, k_w, k_b = jax.random.split(key, 3)

    # Small shapes consistent with the module: N=2, Cin=3, spatial=16.
    N, Cin, H, W = 2, 3, 16, 16
    Cout, KH, KW = 6, 3, 3

    x = jax.random.normal(k_x, (N, Cin, H, W), dtype=jnp.float32)
    # Deterministic synthetic parameters (PyTorch Conv2d shapes: OIHW weight, (Cout,) bias).
    fan_in = Cin * KH * KW
    bound = 1.0 / (fan_in ** 0.5)
    w = jax.random.uniform(k_w, (Cout, Cin, KH, KW), dtype=jnp.float32,
                           minval=-bound, maxval=bound)
    b = jax.random.uniform(k_b, (Cout,), dtype=jnp.float32,
                           minval=-bound, maxval=bound)

    y = tudui_forward(x, w, b)
    y = jax.block_until_ready(y)

    # Sanity check against XLA's conv (silent on success).
    y_ref = jax.lax.conv_general_dilated(
        x, w, window_strides=(1, 1), padding="VALID",
        dimension_numbers=("NCHW", "OIHW", "NCHW")) + b[None, :, None, None]
    assert y.shape == (N, Cout, H - KH + 1, W - KW + 1)
    assert jnp.allclose(y, y_ref, atol=1e-4, rtol=1e-4)

    print("KERNEL_OK")
</pallas_src>

<mosaic_0001>
module attributes {stable_mosaic.version = 11 : i64} {
  func.func @_conv2d_kernel(%arg0: i32, %arg1: memref<6x384xf32, #tpu.memory_space<vmem>>, %arg2: memref<8x27xf32, #tpu.memory_space<vmem>>, %arg3: memref<8x1xf32, #tpu.memory_space<vmem>>, %arg4: memref<2x8x256xf32, #tpu.memory_space<vmem>>) attributes {dimension_semantics = [#tpu.dimension_semantics<arbitrary>], iteration_bounds = array<i64: 1>, scalar_prefetch = 0 : i64, scratch_operands = 0 : i64, tpu.core_type = #tpu.core_type<tc>, window_params = [{pipeline_mode = #tpu.pipeline_mode<synchronous>, transform_indices = @transform_0, window_bounds = array<i64: 6, 384>}, {pipeline_mode = #tpu.pipeline_mode<synchronous>, transform_indices = @transform_1, window_bounds = array<i64: 8, 27>}, {pipeline_mode = #tpu.pipeline_mode<synchronous>, transform_indices = @transform_2, window_bounds = array<i64: 8, 1>}, {pipeline_mode = #tpu.pipeline_mode<synchronous>, transform_indices = @transform_3, window_bounds = array<i64: 2, 8, 256>}]} {
    %c0 = arith.constant 0 : index
    %c0_0 = arith.constant 0 : index
    %0 = vector.load %arg1[%c0, %c0_0] : memref<6x384xf32, #tpu.memory_space<vmem>>, vector<6x384xf32>
    %c0_1 = arith.constant 0 : index
    %c0_2 = arith.constant 0 : index
    %1 = vector.load %arg2[%c0_1, %c0_2] : memref<8x27xf32, #tpu.memory_space<vmem>>, vector<8x27xf32>
    %2 = vector.extract_strided_slice %1 {offsets = [0, 0], sizes = [8, 1], strides = [1, 1]} : vector<8x27xf32> to vector<8x1xf32>
    %3 = vector.extract_strided_slice %1 {offsets = [0, 1], sizes = [8, 1], strides = [1, 1]} : vector<8x27xf32> to vector<8x1xf32>
    %4 = vector.extract_strided_slice %1 {offsets = [0, 2], sizes = [8, 1], strides = [1, 1]} : vector<8x27xf32> to vector<8x1xf32>
    %5 = vector.extract_strided_slice %1 {offsets = [0, 3], sizes = [8, 1], strides = [1, 1]} : vector<8x27xf32> to vector<8x1xf32>
    %6 = vector.extract_strided_slice %1 {offsets = [0, 4], sizes = [8, 1], strides = [1, 1]} : vector<8x27xf32> to vector<8x1xf32>
    %7 = vector.extract_strided_slice %1 {offsets = [0, 5], sizes = [8, 1], strides = [1, 1]} : vector<8x27xf32> to vector<8x1xf32>
    %8 = vector.extract_strided_slice %1 {offsets = [0, 6], sizes = [8, 1], strides = [1, 1]} : vector<8x27xf32> to vector<8x1xf32>
    %9 = vector.extract_strided_slice %1 {offsets = [0, 7], sizes = [8, 1], strides = [1, 1]} : vector<8x27xf32> to vector<8x1xf32>
    %10 = vector.extract_strided_slice %1 {offsets = [0, 8], sizes = [8, 1], strides = [1, 1]} : vector<8x27xf32> to vector<8x1xf32>
    %11 = vector.extract_strided_slice %1 {offsets = [0, 9], sizes = [8, 1], strides = [1, 1]} : vector<8x27xf32> to vector<8x1xf32>
    %12 = vector.extract_strided_slice %1 {offsets = [0, 10], sizes = [8, 1], strides = [1, 1]} : vector<8x27xf32> to vector<8x1xf32>
    %13 = vector.extract_strided_slice %1 {offsets = [0, 11], sizes = [8, 1], strides = [1, 1]} : vector<8x27xf32> to vector<8x1xf32>
    %14 = vector.extract_strided_slice %1 {offsets = [0, 12], sizes = [8, 1], strides = [1, 1]} : vector<8x27xf32> to vector<8x1xf32>
    %15 = vector.extract_strided_slice %1 {offsets = [0, 13], sizes = [8, 1], strides = [1, 1]} : vector<8x27xf32> to vector<8x1xf32>
    %16 = vector.extract_strided_slice %1 {offsets = [0, 14], sizes = [8, 1], strides = [1, 1]} : vector<8x27xf32> to vector<8x1xf32>
    %17 = vector.extract_strided_slice %1 {offsets = [0, 15], sizes = [8, 1], strides = [1, 1]} : vector<8x27xf32> to vector<8x1xf32>
    %18 = vector.extract_strided_slice %1 {offsets = [0, 16], sizes = [8, 1], strides = [1, 1]} : vector<8x27xf32> to vector<8x1xf32>
    %19 = vector.extract_strided_slice %1 {offsets = [0, 17], sizes = [8, 1], strides = [1, 1]} : vector<8x27xf32> to vector<8x1xf32>
    %20 = vector.extract_strided_slice %1 {offsets = [0, 18], sizes = [8, 1], strides = [1, 1]} : vector<8x27xf32> to vector<8x1xf32>
    %21 = vector.extract_strided_slice %1 {offsets = [0, 19], sizes = [8, 1], strides = [1, 1]} : vector<8x27xf32> to vector<8x1xf32>
    %22 = vector.extract_strided_slice %1 {offsets = [0, 20], sizes = [8, 1], strides = [1, 1]} : vector<8x27xf32> to vector<8x1xf32>
    %23 = vector.extract_strided_slice %1 {offsets = [0, 21], sizes = [8, 1], strides = [1, 1]} : vector<8x27xf32> to vector<8x1xf32>
    %24 = vector.extract_strided_slice %1 {offsets = [0, 22], sizes = [8, 1], strides = [1, 1]} : vector<8x27xf32> to vector<8x1xf32>
    %25 = vector.extract_strided_slice %1 {offsets = [0, 23], sizes = [8, 1], strides = [1, 1]} : vector<8x27xf32> to vector<8x1xf32>
    %26 = vector.extract_strided_slice %1 {offsets = [0, 24], sizes = [8, 1], strides = [1, 1]} : vector<8x27xf32> to vector<8x1xf32>
    %27 = vector.extract_strided_slice %1 {offsets = [0, 25], sizes = [8, 1], strides = [1, 1]} : vector<8x27xf32> to vector<8x1xf32>
    %28 = vector.extract_strided_slice %1 {offsets = [0, 26], sizes = [8, 1], strides = [1, 1]} : vector<8x27xf32> to vector<8x1xf32>
    %c0_3 = arith.constant 0 : index
    %c0_4 = arith.constant 0 : index
    %29 = vector.load %arg3[%c0_3, %c0_4] : memref<8x1xf32, #tpu.memory_space<vmem>>, vector<8x1xf32>
    %30 = vector.shape_cast %29 : vector<8x1xf32> to vector<8x1xf32>
    %31 = vector.broadcast %30 : vector<8x1xf32> to vector<8x256xf32>
    %32 = vector.extract_strided_slice %0 {offsets = [0, 0], sizes = [6, 256], strides = [1, 1]} : vector<6x384xf32> to vector<6x256xf32>
    %33 = vector.extract_strided_slice %32 {offsets = [0, 0], sizes = [1, 256], strides = [1, 1]} : vector<6x256xf32> to vector<1x256xf32>
    %34 = vector.shape_cast %33 : vector<1x256xf32> to vector<256xf32>
    %35 = vector.shape_cast %34 : vector<256xf32> to vector<1x256xf32>
    %36 = vector.broadcast %2 : vector<8x1xf32> to vector<8x256xf32>
    %37 = vector.broadcast %35 : vector<1x256xf32> to vector<8x256xf32>
    %38 = arith.mulf %36, %37 : vector<8x256xf32>
    %39 = arith.addf %31, %38 : vector<8x256xf32>
    %40 = vector.extract_strided_slice %32 {offsets = [3, 0], sizes = [1, 256], strides = [1, 1]} : vector<6x256xf32> to vector<1x256xf32>
    %41 = vector.shape_cast %40 : vector<1x256xf32> to vector<256xf32>
    %42 = vector.shape_cast %41 : vector<256xf32> to vector<1x256xf32>
    %43 = vector.broadcast %2 : vector<8x1xf32> to vector<8x256xf32>
    %44 = vector.broadcast %42 : vector<1x256xf32> to vector<8x256xf32>
    %45 = arith.mulf %43, %44 : vector<8x256xf32>
    %46 = arith.addf %31, %45 : vector<8x256xf32>
    %47 = vector.extract_strided_slice %32 {offsets = [1, 0], sizes = [1, 256], strides = [1, 1]} : vector<6x256xf32> to vector<1x256xf32>
    %48 = vector.shape_cast %47 : vector<1x256xf32> to vector<256xf32>
    %49 = vector.shape_cast %48 : vector<256xf32> to vector<1x256xf32>
    %50 = vector.broadcast %11 : vector<8x1xf32> to vector<8x256xf32>
    %51 = vector.broadcast %49 : vector<1x256xf32> to vector<8x256xf32>
    %52 = arith.mulf %50, %51 : vector<8x256xf32>
    %53 = arith.addf %39, %52 : vector<8x256xf32>
    %54 = vector.extract_strided_slice %32 {offsets = [4, 0], sizes = [1, 256], strides = [1, 1]} : vector<6x256xf32> to vector<1x256xf32>
    %55 = vector.shape_cast %54 : vector<1x256xf32> to vector<256xf32>
    %56 = vector.shape_cast %55 : vector<256xf32> to vector<1x256xf32>
    %57 = vector.broadcast %11 : vector<8x1xf32> to vector<8x256xf32>
    %58 = vector.broadcast %56 : vector<1x256xf32> to vector<8x256xf32>
    %59 = arith.mulf %57, %58 : vector<8x256xf32>
    %60 = arith.addf %46, %59 : vector<8x256xf32>
    %61 = vector.extract_strided_slice %32 {offsets = [2, 0], sizes = [1, 256], strides = [1, 1]} : vector<6x256xf32> to vector<1x256xf32>
    %62 = vector.shape_cast %61 : vector<1x256xf32> to vector<256xf32>
    %63 = vector.shape_cast %62 : vector<256xf32> to vector<1x256xf32>
    %64 = vector.broadcast %20 : vector<8x1xf32> to vector<8x256xf32>
    %65 = vector.broadcast %63 : vector<1x256xf32> to vector<8x256xf32>
    %66 = arith.mulf %64, %65 : vector<8x256xf32>
    %67 = arith.addf %53, %66 : vector<8x256xf32>
    %68 = vector.extract_strided_slice %32 {offsets = [5, 0], sizes = [1, 256], strides = [1, 1]} : vector<6x256xf32> to vector<1x256xf32>
    %69 = vector.shape_cast %68 : vector<1x256xf32> to vector<256xf32>
    %70 = vector.shape_cast %69 : vector<256xf32> to vector<1x256xf32>
    %71 = vector.broadcast %20 : vector<8x1xf32> to vector<8x256xf32>
    %72 = vector.broadcast %70 : vector<1x256xf32> to vector<8x256xf32>
    %73 = arith.mulf %71, %72 : vector<8x256xf32>
    %74 = arith.addf %60, %73 : vector<8x256xf32>
    %75 = vector.extract_strided_slice %0 {offsets = [0, 1], sizes = [6, 256], strides = [1, 1]} : vector<6x384xf32> to vector<6x256xf32>
    %76 = vector.extract_strided_slice %75 {offsets = [0, 0], sizes = [1, 256], strides = [1, 1]} : vector<6x256xf32> to vector<1x256xf32>
    %77 = vector.shape_cast %76 : vector<1x256xf32> to vector<256xf32>
    %78 = vector.shape_cast %77 : vector<256xf32> to vector<1x256xf32>
    %79 = vector.broadcast %3 : vector<8x1xf32> to vector<8x256xf32>
    %80 = vector.broadcast %78 : vector<1x256xf32> to vector<8x256xf32>
    %81 = arith.mulf %79, %80 : vector<8x256xf32>
    %82 = arith.addf %67, %81 : vector<8x256xf32>
    %83 = vector.extract_strided_slice %75 {offsets = [3, 0], sizes = [1, 256], strides = [1, 1]} : vector<6x256xf32> to vector<1x256xf32>
    %84 = vector.shape_cast %83 : vector<1x256xf32> to vector<256xf32>
    %85 = vector.shape_cast %84 : vector<256xf32> to vector<1x256xf32>
    %86 = vector.broadcast %3 : vector<8x1xf32> to vector<8x256xf32>
    %87 = vector.broadcast %85 : vector<1x256xf32> to vector<8x256xf32>
    %88 = arith.mulf %86, %87 : vector<8x256xf32>
    %89 = arith.addf %74, %88 : vector<8x256xf32>
    %90 = vector.extract_strided_slice %75 {offsets = [1, 0], sizes = [1, 256], strides = [1, 1]} : vector<6x256xf32> to vector<1x256xf32>
    %91 = vector.shape_cast %90 : vector<1x256xf32> to vector<256xf32>
    %92 = vector.shape_cast %91 : vector<256xf32> to vector<1x256xf32>
    %93 = vector.broadcast %12 : vector<8x1xf32> to vector<8x256xf32>
    %94 = vector.broadcast %92 : vector<1x256xf32> to vector<8x256xf32>
    %95 = arith.mulf %93, %94 : vector<8x256xf32>
    %96 = arith.addf %82, %95 : vector<8x256xf32>
    %97 = vector.extract_strided_slice %75 {offsets = [4, 0], sizes = [1, 256], strides = [1, 1]} : vector<6x256xf32> to vector<1x256xf32>
    %98 = vector.shape_cast %97 : vector<1x256xf32> to vector<256xf32>
    %99 = vector.shape_cast %98 : vector<256xf32> to vector<1x256xf32>
    %100 = vector.broadcast %12 : vector<8x1xf32> to vector<8x256xf32>
    %101 = vector.broadcast %99 : vector<1x256xf32> to vector<8x256xf32>
    %102 = arith.mulf %100, %101 : vector<8x256xf32>
    %103 = arith.addf %89, %102 : vector<8x256xf32>
    %104 = vector.extract_strided_slice %75 {offsets = [2, 0], sizes = [1, 256], strides = [1, 1]} : vector<6x256xf32> to vector<1x256xf32>
    %105 = vector.shape_cast %104 : vector<1x256xf32> to vector<256xf32>
    %106 = vector.shape_cast %105 : vector<256xf32> to vector<1x256xf32>
    %107 = vector.broadcast %21 : vector<8x1xf32> to vector<8x256xf32>
    %108 = vector.broadcast %106 : vector<1x256xf32> to vector<8x256xf32>
    %109 = arith.mulf %107, %108 : vector<8x256xf32>
    %110 = arith.addf %96, %109 : vector<8x256xf32>
    %111 = vector.extract_strided_slice %75 {offsets = [5, 0], sizes = [1, 256], strides = [1, 1]} : vector<6x256xf32> to vector<1x256xf32>
    %112 = vector.shape_cast %111 : vector<1x256xf32> to vector<256xf32>
    %113 = vector.shape_cast %112 : vector<256xf32> to vector<1x256xf32>
    %114 = vector.broadcast %21 : vector<8x1xf32> to vector<8x256xf32>
    %115 = vector.broadcast %113 : vector<1x256xf32> to vector<8x256xf32>
    %116 = arith.mulf %114, %115 : vector<8x256xf32>
    %117 = arith.addf %103, %116 : vector<8x256xf32>
    %118 = vector.extract_strided_slice %0 {offsets = [0, 2], sizes = [6, 256], strides = [1, 1]} : vector<6x384xf32> to vector<6x256xf32>
    %119 = vector.extract_strided_slice %118 {offsets = [0, 0], sizes = [1, 256], strides = [1, 1]} : vector<6x256xf32> to vector<1x256xf32>
    %120 = vector.shape_cast %119 : vector<1x256xf32> to vector<256xf32>
    %121 = vector.shape_cast %120 : vector<256xf32> to vector<1x256xf32>
    %122 = vector.broadcast %4 : vector<8x1xf32> to vector<8x256xf32>
    %123 = vector.broadcast %121 : vector<1x256xf32> to vector<8x256xf32>
    %124 = arith.mulf %122, %123 : vector<8x256xf32>
    %125 = arith.addf %110, %124 : vector<8x256xf32>
    %126 = vector.extract_strided_slice %118 {offsets = [3, 0], sizes = [1, 256], strides = [1, 1]} : vector<6x256xf32> to vector<1x256xf32>
    %127 = vector.shape_cast %126 : vector<1x256xf32> to vector<256xf32>
    %128 = vector.shape_cast %127 : vector<256xf32> to vector<1x256xf32>
    %129 = vector.broadcast %4 : vector<8x1xf32> to vector<8x256xf32>
    %130 = vector.broadcast %128 : vector<1x256xf32> to vector<8x256xf32>
    %131 = arith.mulf %129, %130 : vector<8x256xf32>
    %132 = arith.addf %117, %131 : vector<8x256xf32>
    %133 = vector.extract_strided_slice %118 {offsets = [1, 0], sizes = [1, 256], strides = [1, 1]} : vector<6x256xf32> to vector<1x256xf32>
    %134 = vector.shape_cast %133 : vector<1x256xf32> to vector<256xf32>
    %135 = vector.shape_cast %134 : vector<256xf32> to vector<1x256xf32>
    %136 = vector.broadcast %13 : vector<8x1xf32> to vector<8x256xf32>
    %137 = vector.broadcast %135 : vector<1x256xf32> to vector<8x256xf32>
    %138 = arith.mulf %136, %137 : vector<8x256xf32>
    %139 = arith.addf %125, %138 : vector<8x256xf32>
    %140 = vector.extract_strided_slice %118 {offsets = [4, 0], sizes = [1, 256], strides = [1, 1]} : vector<6x256xf32> to vector<1x256xf32>
    %141 = vector.shape_cast %140 : vector<1x256xf32> to vector<256xf32>
    %142 = vector.shape_cast %141 : vector<256xf32> to vector<1x256xf32>
    %143 = vector.broadcast %13 : vector<8x1xf32> to vector<8x256xf32>
    %144 = vector.broadcast %142 : vector<1x256xf32> to vector<8x256xf32>
    %145 = arith.mulf %143, %144 : vector<8x256xf32>
    %146 = arith.addf %132, %145 : vector<8x256xf32>
    %147 = vector.extract_strided_slice %118 {offsets = [2, 0], sizes = [1, 256], strides = [1, 1]} : vector<6x256xf32> to vector<1x256xf32>
    %148 = vector.shape_cast %147 : vector<1x256xf32> to vector<256xf32>
    %149 = vector.shape_cast %148 : vector<256xf32> to vector<1x256xf32>
    %150 = vector.broadcast %22 : vector<8x1xf32> to vector<8x256xf32>
    %151 = vector.broadcast %149 : vector<1x256xf32> to vector<8x256xf32>
    %152 = arith.mulf %150, %151 : vector<8x256xf32>
    %153 = arith.addf %139, %152 : vector<8x256xf32>
    %154 = vector.extract_strided_slice %118 {offsets = [5, 0], sizes = [1, 256], strides = [1, 1]} : vector<6x256xf32> to vector<1x256xf32>
    %155 = vector.shape_cast %154 : vector<1x256xf32> to vector<256xf32>
    %156 = vector.shape_cast %155 : vector<256xf32> to vector<1x256xf32>
    %157 = vector.broadcast %22 : vector<8x1xf32> to vector<8x256xf32>
    %158 = vector.broadcast %156 : vector<1x256xf32> to vector<8x256xf32>
    %159 = arith.mulf %157, %158 : vector<8x256xf32>
    %160 = arith.addf %146, %159 : vector<8x256xf32>
    %161 = vector.extract_strided_slice %0 {offsets = [0, 16], sizes = [6, 256], strides = [1, 1]} : vector<6x384xf32> to vector<6x256xf32>
    %162 = vector.extract_strided_slice %161 {offsets = [0, 0], sizes = [1, 256], strides = [1, 1]} : vector<6x256xf32> to vector<1x256xf32>
    %163 = vector.shape_cast %162 : vector<1x256xf32> to vector<256xf32>
    %164 = vector.shape_cast %163 : vector<256xf32> to vector<1x256xf32>
    %165 = vector.broadcast %5 : vector<8x1xf32> to vector<8x256xf32>
    %166 = vector.broadcast %164 : vector<1x256xf32> to vector<8x256xf32>
    %167 = arith.mulf %165, %166 : vector<8x256xf32>
    %168 = arith.addf %153, %167 : vector<8x256xf32>
    %169 = vector.extract_strided_slice %161 {offsets = [3, 0], sizes = [1, 256], strides = [1, 1]} : vector<6x256xf32> to vector<1x256xf32>
    %170 = vector.shape_cast %169 : vector<1x256xf32> to vector<256xf32>
    %171 = vector.shape_cast %170 : vector<256xf32> to vector<1x256xf32>
    %172 = vector.broadcast %5 : vector<8x1xf32> to vector<8x256xf32>
    %173 = vector.broadcast %171 : vector<1x256xf32> to vector<8x256xf32>
    %174 = arith.mulf %172, %173 : vector<8x256xf32>
    %175 = arith.addf %160, %174 : vector<8x256xf32>
    %176 = vector.extract_strided_slice %161 {offsets = [1, 0], sizes = [1, 256], strides = [1, 1]} : vector<6x256xf32> to vector<1x256xf32>
    %177 = vector.shape_cast %176 : vector<1x256xf32> to vector<256xf32>
    %178 = vector.shape_cast %177 : vector<256xf32> to vector<1x256xf32>
    %179 = vector.broadcast %14 : vector<8x1xf32> to vector<8x256xf32>
    %180 = vector.broadcast %178 : vector<1x256xf32> to vector<8x256xf32>
    %181 = arith.mulf %179, %180 : vector<8x256xf32>
    %182 = arith.addf %168, %181 : vector<8x256xf32>
    %183 = vector.extract_strided_slice %161 {offsets = [4, 0], sizes = [1, 256], strides = [1, 1]} : vector<6x256xf32> to vector<1x256xf32>
    %184 = vector.shape_cast %183 : vector<1x256xf32> to vector<256xf32>
    %185 = vector.shape_cast %184 : vector<256xf32> to vector<1x256xf32>
    %186 = vector.broadcast %14 : vector<8x1xf32> to vector<8x256xf32>
    %187 = vector.broadcast %185 : vector<1x256xf32> to vector<8x256xf32>
    %188 = arith.mulf %186, %187 : vector<8x256xf32>
    %189 = arith.addf %175, %188 : vector<8x256xf32>
    %190 = vector.extract_strided_slice %161 {offsets = [2, 0], sizes = [1, 256], strides = [1, 1]} : vector<6x256xf32> to vector<1x256xf32>
    %191 = vector.shape_cast %190 : vector<1x256xf32> to vector<256xf32>
    %192 = vector.shape_cast %191 : vector<256xf32> to vector<1x256xf32>
    %193 = vector.broadcast %23 : vector<8x1xf32> to vector<8x256xf32>
    %194 = vector.broadcast %192 : vector<1x256xf32> to vector<8x256xf32>
    %195 = arith.mulf %193, %194 : vector<8x256xf32>
    %196 = arith.addf %182, %195 : vector<8x256xf32>
    %197 = vector.extract_strided_slice %161 {offsets = [5, 0], sizes = [1, 256], strides = [1, 1]} : vector<6x256xf32> to vector<1x256xf32>
    %198 = vector.shape_cast %197 : vector<1x256xf32> to vector<256xf32>
    %199 = vector.shape_cast %198 : vector<256xf32> to vector<1x256xf32>
    %200 = vector.broadcast %23 : vector<8x1xf32> to vector<8x256xf32>
    %201 = vector.broadcast %199 : vector<1x256xf32> to vector<8x256xf32>
    %202 = arith.mulf %200, %201 : vector<8x256xf32>
    %203 = arith.addf %189, %202 : vector<8x256xf32>
    %204 = vector.extract_strided_slice %0 {offsets = [0, 17], sizes = [6, 256], strides = [1, 1]} : vector<6x384xf32> to vector<6x256xf32>
    %205 = vector.extract_strided_slice %204 {offsets = [0, 0], sizes = [1, 256], strides = [1, 1]} : vector<6x256xf32> to vector<1x256xf32>
    %206 = vector.shape_cast %205 : vector<1x256xf32> to vector<256xf32>
    %207 = vector.shape_cast %206 : vector<256xf32> to vector<1x256xf32>
    %208 = vector.broadcast %6 : vector<8x1xf32> to vector<8x256xf32>
    %209 = vector.broadcast %207 : vector<1x256xf32> to vector<8x256xf32>
    %210 = arith.mulf %208, %209 : vector<8x256xf32>
    %211 = arith.addf %196, %210 : vector<8x256xf32>
    %212 = vector.extract_strided_slice %204 {offsets = [3, 0], sizes = [1, 256], strides = [1, 1]} : vector<6x256xf32> to vector<1x256xf32>
    %213 = vector.shape_cast %212 : vector<1x256xf32> to vector<256xf32>
    %214 = vector.shape_cast %213 : vector<256xf32> to vector<1x256xf32>
    %215 = vector.broadcast %6 : vector<8x1xf32> to vector<8x256xf32>
    %216 = vector.broadcast %214 : vector<1x256xf32> to vector<8x256xf32>
    %217 = arith.mulf %215, %216 : vector<8x256xf32>
    %218 = arith.addf %203, %217 : vector<8x256xf32>
    %219 = vector.extract_strided_slice %204 {offsets = [1, 0], sizes = [1, 256], strides = [1, 1]} : vector<6x256xf32> to vector<1x256xf32>
    %220 = vector.shape_cast %219 : vector<1x256xf32> to vector<256xf32>
    %221 = vector.shape_cast %220 : vector<256xf32> to vector<1x256xf32>
    %222 = vector.broadcast %15 : vector<8x1xf32> to vector<8x256xf32>
    %223 = vector.broadcast %221 : vector<1x256xf32> to vector<8x256xf32>
    %224 = arith.mulf %222, %223 : vector<8x256xf32>
    %225 = arith.addf %211, %224 : vector<8x256xf32>
    %226 = vector.extract_strided_slice %204 {offsets = [4, 0], sizes = [1, 256], strides = [1, 1]} : vector<6x256xf32> to vector<1x256xf32>
    %227 = vector.shape_cast %226 : vector<1x256xf32> to vector<256xf32>
    %228 = vector.shape_cast %227 : vector<256xf32> to vector<1x256xf32>
    %229 = vector.broadcast %15 : vector<8x1xf32> to vector<8x256xf32>
    %230 = vector.broadcast %228 : vector<1x256xf32> to vector<8x256xf32>
    %231 = arith.mulf %229, %230 : vector<8x256xf32>
    %232 = arith.addf %218, %231 : vector<8x256xf32>
    %233 = vector.extract_strided_slice %204 {offsets = [2, 0], sizes = [1, 256], strides = [1, 1]} : vector<6x256xf32> to vector<1x256xf32>
    %234 = vector.shape_cast %233 : vector<1x256xf32> to vector<256xf32>
    %235 = vector.shape_cast %234 : vector<256xf32> to vector<1x256xf32>
    %236 = vector.broadcast %24 : vector<8x1xf32> to vector<8x256xf32>
    %237 = vector.broadcast %235 : vector<1x256xf32> to vector<8x256xf32>
    %238 = arith.mulf %236, %237 : vector<8x256xf32>
    %239 = arith.addf %225, %238 : vector<8x256xf32>
    %240 = vector.extract_strided_slice %204 {offsets = [5, 0], sizes = [1, 256], strides = [1, 1]} : vector<6x256xf32> to vector<1x256xf32>
    %241 = vector.shape_cast %240 : vector<1x256xf32> to vector<256xf32>
    %242 = vector.shape_cast %241 : vector<256xf32> to vector<1x256xf32>
    %243 = vector.broadcast %24 : vector<8x1xf32> to vector<8x256xf32>
    %244 = vector.broadcast %242 : vector<1x256xf32> to vector<8x256xf32>
    %245 = arith.mulf %243, %244 : vector<8x256xf32>
    %246 = arith.addf %232, %245 : vector<8x256xf32>
    %247 = vector.extract_strided_slice %0 {offsets = [0, 18], sizes = [6, 256], strides = [1, 1]} : vector<6x384xf32> to vector<6x256xf32>
    %248 = vector.extract_strided_slice %247 {offsets = [0, 0], sizes = [1, 256], strides = [1, 1]} : vector<6x256xf32> to vector<1x256xf32>
    %249 = vector.shape_cast %248 : vector<1x256xf32> to vector<256xf32>
    %250 = vector.shape_cast %249 : vector<256xf32> to vector<1x256xf32>
    %251 = vector.broadcast %7 : vector<8x1xf32> to vector<8x256xf32>
    %252 = vector.broadcast %250 : vector<1x256xf32> to vector<8x256xf32>
    %253 = arith.mulf %251, %252 : vector<8x256xf32>
    %254 = arith.addf %239, %253 : vector<8x256xf32>
    %255 = vector.extract_strided_slice %247 {offsets = [3, 0], sizes = [1, 256], strides = [1, 1]} : vector<6x256xf32> to vector<1x256xf32>
    %256 = vector.shape_cast %255 : vector<1x256xf32> to vector<256xf32>
    %257 = vector.shape_cast %256 : vector<256xf32> to vector<1x256xf32>
    %258 = vector.broadcast %7 : vector<8x1xf32> to vector<8x256xf32>
    %259 = vector.broadcast %257 : vector<1x256xf32> to vector<8x256xf32>
    %260 = arith.mulf %258, %259 : vector<8x256xf32>
    %261 = arith.addf %246, %260 : vector<8x256xf32>
    %262 = vector.extract_strided_slice %247 {offsets = [1, 0], sizes = [1, 256], strides = [1, 1]} : vector<6x256xf32> to vector<1x256xf32>
    %263 = vector.shape_cast %262 : vector<1x256xf32> to vector<256xf32>
    %264 = vector.shape_cast %263 : vector<256xf32> to vector<1x256xf32>
    %265 = vector.broadcast %16 : vector<8x1xf32> to vector<8x256xf32>
    %266 = vector.broadcast %264 : vector<1x256xf32> to vector<8x256xf32>
    %267 = arith.mulf %265, %266 : vector<8x256xf32>
    %268 = arith.addf %254, %267 : vector<8x256xf32>
    %269 = vector.extract_strided_slice %247 {offsets = [4, 0], sizes = [1, 256], strides = [1, 1]} : vector<6x256xf32> to vector<1x256xf32>
    %270 = vector.shape_cast %269 : vector<1x256xf32> to vector<256xf32>
    %271 = vector.shape_cast %270 : vector<256xf32> to vector<1x256xf32>
    %272 = vector.broadcast %16 : vector<8x1xf32> to vector<8x256xf32>
    %273 = vector.broadcast %271 : vector<1x256xf32> to vector<8x256xf32>
    %274 = arith.mulf %272, %273 : vector<8x256xf32>
    %275 = arith.addf %261, %274 : vector<8x256xf32>
    %276 = vector.extract_strided_slice %247 {offsets = [2, 0], sizes = [1, 256], strides = [1, 1]} : vector<6x256xf32> to vector<1x256xf32>
    %277 = vector.shape_cast %276 : vector<1x256xf32> to vector<256xf32>
    %278 = vector.shape_cast %277 : vector<256xf32> to vector<1x256xf32>
    %279 = vector.broadcast %25 : vector<8x1xf32> to vector<8x256xf32>
    %280 = vector.broadcast %278 : vector<1x256xf32> to vector<8x256xf32>
    %281 = arith.mulf %279, %280 : vector<8x256xf32>
    %282 = arith.addf %268, %281 : vector<8x256xf32>
    %283 = vector.extract_strided_slice %247 {offsets = [5, 0], sizes = [1, 256], strides = [1, 1]} : vector<6x256xf32> to vector<1x256xf32>
    %284 = vector.shape_cast %283 : vector<1x256xf32> to vector<256xf32>
    %285 = vector.shape_cast %284 : vector<256xf32> to vector<1x256xf32>
    %286 = vector.broadcast %25 : vector<8x1xf32> to vector<8x256xf32>
    %287 = vector.broadcast %285 : vector<1x256xf32> to vector<8x256xf32>
    %288 = arith.mulf %286, %287 : vector<8x256xf32>
    %289 = arith.addf %275, %288 : vector<8x256xf32>
    %290 = vector.extract_strided_slice %0 {offsets = [0, 32], sizes = [6, 256], strides = [1, 1]} : vector<6x384xf32> to vector<6x256xf32>
    %291 = vector.extract_strided_slice %290 {offsets = [0, 0], sizes = [1, 256], strides = [1, 1]} : vector<6x256xf32> to vector<1x256xf32>
    %292 = vector.shape_cast %291 : vector<1x256xf32> to vector<256xf32>
    %293 = vector.shape_cast %292 : vector<256xf32> to vector<1x256xf32>
    %294 = vector.broadcast %8 : vector<8x1xf32> to vector<8x256xf32>
    %295 = vector.broadcast %293 : vector<1x256xf32> to vector<8x256xf32>
    %296 = arith.mulf %294, %295 : vector<8x256xf32>
    %297 = arith.addf %282, %296 : vector<8x256xf32>
    %298 = vector.extract_strided_slice %290 {offsets = [3, 0], sizes = [1, 256], strides = [1, 1]} : vector<6x256xf32> to vector<1x256xf32>
    %299 = vector.shape_cast %298 : vector<1x256xf32> to vector<256xf32>
    %300 = vector.shape_cast %299 : vector<256xf32> to vector<1x256xf32>
    %301 = vector.broadcast %8 : vector<8x1xf32> to vector<8x256xf32>
    %302 = vector.broadcast %300 : vector<1x256xf32> to vector<8x256xf32>
    %303 = arith.mulf %301, %302 : vector<8x256xf32>
    %304 = arith.addf %289, %303 : vector<8x256xf32>
    %305 = vector.extract_strided_slice %290 {offsets = [1, 0], sizes = [1, 256], strides = [1, 1]} : vector<6x256xf32> to vector<1x256xf32>
    %306 = vector.shape_cast %305 : vector<1x256xf32> to vector<256xf32>
    %307 = vector.shape_cast %306 : vector<256xf32> to vector<1x256xf32>
    %308 = vector.broadcast %17 : vector<8x1xf32> to vector<8x256xf32>
    %309 = vector.broadcast %307 : vector<1x256xf32> to vector<8x256xf32>
    %310 = arith.mulf %308, %309 : vector<8x256xf32>
    %311 = arith.addf %297, %310 : vector<8x256xf32>
    %312 = vector.extract_strided_slice %290 {offsets = [4, 0], sizes = [1, 256], strides = [1, 1]} : vector<6x256xf32> to vector<1x256xf32>
    %313 = vector.shape_cast %312 : vector<1x256xf32> to vector<256xf32>
    %314 = vector.shape_cast %313 : vector<256xf32> to vector<1x256xf32>
    %315 = vector.broadcast %17 : vector<8x1xf32> to vector<8x256xf32>
    %316 = vector.broadcast %314 : vector<1x256xf32> to vector<8x256xf32>
    %317 = arith.mulf %315, %316 : vector<8x256xf32>
    %318 = arith.addf %304, %317 : vector<8x256xf32>
    %319 = vector.extract_strided_slice %290 {offsets = [2, 0], sizes = [1, 256], strides = [1, 1]} : vector<6x256xf32> to vector<1x256xf32>
    %320 = vector.shape_cast %319 : vector<1x256xf32> to vector<256xf32>
    %321 = vector.shape_cast %320 : vector<256xf32> to vector<1x256xf32>
    %322 = vector.broadcast %26 : vector<8x1xf32> to vector<8x256xf32>
    %323 = vector.broadcast %321 : vector<1x256xf32> to vector<8x256xf32>
    %324 = arith.mulf %322, %323 : vector<8x256xf32>
    %325 = arith.addf %311, %324 : vector<8x256xf32>
    %326 = vector.extract_strided_slice %290 {offsets = [5, 0], sizes = [1, 256], strides = [1, 1]} : vector<6x256xf32> to vector<1x256xf32>
    %327 = vector.shape_cast %326 : vector<1x256xf32> to vector<256xf32>
    %328 = vector.shape_cast %327 : vector<256xf32> to vector<1x256xf32>
    %329 = vector.broadcast %26 : vector<8x1xf32> to vector<8x256xf32>
    %330 = vector.broadcast %328 : vector<1x256xf32> to vector<8x256xf32>
    %331 = arith.mulf %329, %330 : vector<8x256xf32>
    %332 = arith.addf %318, %331 : vector<8x256xf32>
    %333 = vector.extract_strided_slice %0 {offsets = [0, 33], sizes = [6, 256], strides = [1, 1]} : vector<6x384xf32> to vector<6x256xf32>
    %334 = vector.extract_strided_slice %333 {offsets = [0, 0], sizes = [1, 256], strides = [1, 1]} : vector<6x256xf32> to vector<1x256xf32>
    %335 = vector.shape_cast %334 : vector<1x256xf32> to vector<256xf32>
    %336 = vector.shape_cast %335 : vector<256xf32> to vector<1x256xf32>
    %337 = vector.broadcast %9 : vector<8x1xf32> to vector<8x256xf32>
    %338 = vector.broadcast %336 : vector<1x256xf32> to vector<8x256xf32>
    %339 = arith.mulf %337, %338 : vector<8x256xf32>
    %340 = arith.addf %325, %339 : vector<8x256xf32>
    %341 = vector.extract_strided_slice %333 {offsets = [3, 0], sizes = [1, 256], strides = [1, 1]} : vector<6x256xf32> to vector<1x256xf32>
    %342 = vector.shape_cast %341 : vector<1x256xf32> to vector<256xf32>
    %343 = vector.shape_cast %342 : vector<256xf32> to vector<1x256xf32>
    %344 = vector.broadcast %9 : vector<8x1xf32> to vector<8x256xf32>
    %345 = vector.broadcast %343 : vector<1x256xf32> to vector<8x256xf32>
    %346 = arith.mulf %344, %345 : vector<8x256xf32>
    %347 = arith.addf %332, %346 : vector<8x256xf32>
    %348 = vector.extract_strided_slice %333 {offsets = [1, 0], sizes = [1, 256], strides = [1, 1]} : vector<6x256xf32> to vector<1x256xf32>
    %349 = vector.shape_cast %348 : vector<1x256xf32> to vector<256xf32>
    %350 = vector.shape_cast %349 : vector<256xf32> to vector<1x256xf32>
    %351 = vector.broadcast %18 : vector<8x1xf32> to vector<8x256xf32>
    %352 = vector.broadcast %350 : vector<1x256xf32> to vector<8x256xf32>
    %353 = arith.mulf %351, %352 : vector<8x256xf32>
    %354 = arith.addf %340, %353 : vector<8x256xf32>
    %355 = vector.extract_strided_slice %333 {offsets = [4, 0], sizes = [1, 256], strides = [1, 1]} : vector<6x256xf32> to vector<1x256xf32>
    %356 = vector.shape_cast %355 : vector<1x256xf32> to vector<256xf32>
    %357 = vector.shape_cast %356 : vector<256xf32> to vector<1x256xf32>
    %358 = vector.broadcast %18 : vector<8x1xf32> to vector<8x256xf32>
    %359 = vector.broadcast %357 : vector<1x256xf32> to vector<8x256xf32>
    %360 = arith.mulf %358, %359 : vector<8x256xf32>
    %361 = arith.addf %347, %360 : vector<8x256xf32>
    %362 = vector.extract_strided_slice %333 {offsets = [2, 0], sizes = [1, 256], strides = [1, 1]} : vector<6x256xf32> to vector<1x256xf32>
    %363 = vector.shape_cast %362 : vector<1x256xf32> to vector<256xf32>
    %364 = vector.shape_cast %363 : vector<256xf32> to vector<1x256xf32>
    %365 = vector.broadcast %27 : vector<8x1xf32> to vector<8x256xf32>
    %366 = vector.broadcast %364 : vector<1x256xf32> to vector<8x256xf32>
    %367 = arith.mulf %365, %366 : vector<8x256xf32>
    %368 = arith.addf %354, %367 : vector<8x256xf32>
    %369 = vector.extract_strided_slice %333 {offsets = [5, 0], sizes = [1, 256], strides = [1, 1]} : vector<6x256xf32> to vector<1x256xf32>
    %370 = vector.shape_cast %369 : vector<1x256xf32> to vector<256xf32>
    %371 = vector.shape_cast %370 : vector<256xf32> to vector<1x256xf32>
    %372 = vector.broadcast %27 : vector<8x1xf32> to vector<8x256xf32>
    %373 = vector.broadcast %371 : vector<1x256xf32> to vector<8x256xf32>
    %374 = arith.mulf %372, %373 : vector<8x256xf32>
    %375 = arith.addf %361, %374 : vector<8x256xf32>
    %376 = vector.extract_strided_slice %0 {offsets = [0, 34], sizes = [6, 256], strides = [1, 1]} : vector<6x384xf32> to vector<6x256xf32>
    %377 = vector.extract_strided_slice %376 {offsets = [0, 0], sizes = [1, 256], strides = [1, 1]} : vector<6x256xf32> to vector<1x256xf32>
    %378 = vector.shape_cast %377 : vector<1x256xf32> to vector<256xf32>
    %379 = vector.shape_cast %378 : vector<256xf32> to vector<1x256xf32>
    %380 = vector.broadcast %10 : vector<8x1xf32> to vector<8x256xf32>
    %381 = vector.broadcast %379 : vector<1x256xf32> to vector<8x256xf32>
    %382 = arith.mulf %380, %381 : vector<8x256xf32>
    %383 = arith.addf %368, %382 : vector<8x256xf32>
    %384 = vector.extract_strided_slice %376 {offsets = [3, 0], sizes = [1, 256], strides = [1, 1]} : vector<6x256xf32> to vector<1x256xf32>
    %385 = vector.shape_cast %384 : vector<1x256xf32> to vector<256xf32>
    %386 = vector.shape_cast %385 : vector<256xf32> to vector<1x256xf32>
    %387 = vector.broadcast %10 : vector<8x1xf32> to vector<8x256xf32>
    %388 = vector.broadcast %386 : vector<1x256xf32> to vector<8x256xf32>
    %389 = arith.mulf %387, %388 : vector<8x256xf32>
    %390 = arith.addf %375, %389 : vector<8x256xf32>
    %391 = vector.extract_strided_slice %376 {offsets = [1, 0], sizes = [1, 256], strides = [1, 1]} : vector<6x256xf32> to vector<1x256xf32>
    %392 = vector.shape_cast %391 : vector<1x256xf32> to vector<256xf32>
    %393 = vector.shape_cast %392 : vector<256xf32> to vector<1x256xf32>
    %394 = vector.broadcast %19 : vector<8x1xf32> to vector<8x256xf32>
    %395 = vector.broadcast %393 : vector<1x256xf32> to vector<8x256xf32>
    %396 = arith.mulf %394, %395 : vector<8x256xf32>
    %397 = arith.addf %383, %396 : vector<8x256xf32>
    %398 = vector.extract_strided_slice %376 {offsets = [4, 0], sizes = [1, 256], strides = [1, 1]} : vector<6x256xf32> to vector<1x256xf32>
    %399 = vector.shape_cast %398 : vector<1x256xf32> to vector<256xf32>
    %400 = vector.shape_cast %399 : vector<256xf32> to vector<1x256xf32>
    %401 = vector.broadcast %19 : vector<8x1xf32> to vector<8x256xf32>
    %402 = vector.broadcast %400 : vector<1x256xf32> to vector<8x256xf32>
    %403 = arith.mulf %401, %402 : vector<8x256xf32>
    %404 = arith.addf %390, %403 : vector<8x256xf32>
    %405 = vector.extract_strided_slice %376 {offsets = [2, 0], sizes = [1, 256], strides = [1, 1]} : vector<6x256xf32> to vector<1x256xf32>
    %406 = vector.shape_cast %405 : vector<1x256xf32> to vector<256xf32>
    %407 = vector.shape_cast %406 : vector<256xf32> to vector<1x256xf32>
    %408 = vector.broadcast %28 : vector<8x1xf32> to vector<8x256xf32>
    %409 = vector.broadcast %407 : vector<1x256xf32> to vector<8x256xf32>
    %410 = arith.mulf %408, %409 : vector<8x256xf32>
    %411 = arith.addf %397, %410 : vector<8x256xf32>
    %412 = vector.extract_strided_slice %376 {offsets = [5, 0], sizes = [1, 256], strides = [1, 1]} : vector<6x256xf32> to vector<1x256xf32>
    %413 = vector.shape_cast %412 : vector<1x256xf32> to vector<256xf32>
    %414 = vector.shape_cast %413 : vector<256xf32> to vector<1x256xf32>
    %415 = vector.broadcast %28 : vector<8x1xf32> to vector<8x256xf32>
    %416 = vector.broadcast %414 : vector<1x256xf32> to vector<8x256xf32>
    %417 = arith.mulf %415, %416 : vector<8x256xf32>
    %418 = arith.addf %404, %417 : vector<8x256xf32>
    %c0_5 = arith.constant 0 : index
    %c0_6 = arith.constant 0 : index
    %c0_7 = arith.constant 0 : index
    %419 = vector.load %arg4[%c0_5, %c0_6, %c0_7] : memref<2x8x256xf32, #tpu.memory_space<vmem>>, vector<1x8x256xf32>
    %420 = vector.shape_cast %419 : vector<1x8x256xf32> to vector<8x256xf32>
    %421 = vector.shape_cast %411 : vector<8x256xf32> to vector<1x8x256xf32>
    tpu.vector_store %arg4[%c0_5, %c0_6, %c0_7], %421 {strides = array<i32>} : memref<2x8x256xf32, #tpu.memory_space<vmem>>, vector<1x8x256xf32>,
    %c1 = arith.constant 1 : index
    %c0_8 = arith.constant 0 : index
    %c0_9 = arith.constant 0 : index
    %422 = vector.load %arg4[%c1, %c0_8, %c0_9] : memref<2x8x256xf32, #tpu.memory_space<vmem>>, vector<1x8x256xf32>
    %423 = vector.shape_cast %422 : vector<1x8x256xf32> to vector<8x256xf32>
    %424 = vector.shape_cast %418 : vector<8x256xf32> to vector<1x8x256xf32>
    tpu.vector_store %arg4[%c1, %c0_8, %c0_9], %424 {strides = array<i32>} : memref<2x8x256xf32, #tpu.memory_space<vmem>>, vector<1x8x256xf32>,
    return
  }
  func.func @transform_0(%arg0: i32) -> (i32, i32) {
    %c0_i32 = arith.constant 0 : i32
    %c0_i32_0 = arith.constant 0 : i32
    %c0_i32_1 = arith.constant 0 : i32
    return %c0_i32, %c0_i32_0 : i32, i32
  }
  func.func @transform_1(%arg0: i32) -> (i32, i32) {
    %c0_i32 = arith.constant 0 : i32
    %c0_i32_0 = arith.constant 0 : i32
    %c0_i32_1 = arith.constant 0 : i32
    return %c0_i32, %c0_i32_0 : i32, i32
  }
  func.func @transform_2(%arg0: i32) -> (i32, i32) {
    %c0_i32 = arith.constant 0 : i32
    %c0_i32_0 = arith.constant 0 : i32
    %c0_i32_1 = arith.constant 0 : i32
    return %c0_i32, %c0_i32_0 : i32, i32
  }
  func.func @transform_3(%arg0: i32) -> (i32, i32, i32) {
    %c0_i32 = arith.constant 0 : i32
    %c0_i32_0 = arith.constant 0 : i32
    %c0_i32_1 = arith.constant 0 : i32
    %c0_i32_2 = arith.constant 0 : i32
    return %c0_i32, %c0_i32_0, %c0_i32_1 : i32, i32, i32
  }
}

</mosaic_0001>

<llo_original>
// kernel: tudui_forward.1
$region0: #{tudui_forward.1}
  #allocation0 [shape = 'u32[]', space=smem, size = 0x4, offset = 0x4, fixed_abs, tag = 'smem constant byte address 0x4 - core index']
  #allocation1 [shape = 'u32[144,128]{1,0:T(1,128)}', space=vmem, size = 0x12000, scoped, tag = 'internal scratch']
  %s0 = inlined_call_operand.vmem [shape: f32[6,384], index: 0, kind: input, shape index: {}]
  %s1 = inlined_call_operand.vmem [shape: f32[8,27], index: 1, kind: input, shape index: {}]
  %s2 = inlined_call_operand.vmem [shape: f32[8,1], index: 2, kind: input, shape index: {}]
  %s3 = inlined_call_operand.vmem [shape: f32[2,8,256], index: 3, kind: output, shape index: {}]
  %s4 = sld [smem:[#allocation0]]
  $region22: #{tudui_forward.1} parent=0
    _
  %s6 = ssub.s32 1, %s4
  %s7 = scalar_select 0, %s6, %s4
  // Predicated region
  $region2: #{tudui_forward.1} parent=0 // pred_check
    _
  $region3: #{tudui_forward.1} parent=0 // pred_check_branch
    %9 = sbr.rel (0) target = $region5
  $region4: #{tudui_forward.1} parent=0 // pred_region
    _
  $region5: #{tudui_forward.1} parent=0 // pred_fallthru
    _
  // Predicated region
  $region6: #{tudui_forward.1} parent=0 // pred_check
    _
  $region7: #{tudui_forward.1} parent=0 // pred_check_branch
    %11 = sbr.rel (0) target = $region9
  $region8: #{tudui_forward.1} parent=0 // pred_region
    _
  $region9: #{tudui_forward.1} parent=0 // pred_fallthru
    _
  // Predicated region
  $region10: #{tudui_forward.1} parent=0 // pred_check
    _
  $region11: #{tudui_forward.1} parent=0 // pred_check_branch
    %13 = sbr.rel (0) target = $region13
  $region12: #{tudui_forward.1} parent=0 // pred_region
    _
  $region13: #{tudui_forward.1} parent=0 // pred_fallthru
    _
  %v14 = vld [vmem:[%s0] sm:$0x3f]
  %v15 = vld [vmem:[%s0 + $0x8] sm:$0x3f]
  %v16 = vld [vmem:[%s0 + $0x10] sm:$0x3f]
  %v17 = vld [vmem:[%s1] sm:$0xff]
  %v18 = vld [vmem:[%s2] sm:$0xff]
  %20 = vset.pattern.permute.xlu0 0
  %21 = vperm.xlu0 %20, %v18
  %v22 = vpop.permute.xlu0 %21
  %25 = vset.pattern.permute.xlu0 0
  %26 = vperm.xlu0 %25, %v17
  %v27 = vpop.permute.xlu0 %26
  %v29 = vlaneseq
  %v30 = vshrl.u32 %v29, 7
  %v31 = vsub.s32 0, %v30
  %v32 = vrot.slane %v14, %v31
  %v33 = vlaneseq
  %v34 = vshrl.u32 %v33, 7
  %v35 = vsub.s32 0, %v34
  %v36 = vrot.slane %v15, %v35
  %v37 = vmul.f32 %v27, %v32
  %v38 = vmul.f32 %v27, %v36
  %v39 = vadd.f32 %v22, %v37
  %v40 = vadd.f32 %v22, %v38
  %v41 = vlaneseq
  %v42 = vshrl.u32 %v41, 7
  %v43 = vsub.s32 3, %v42
  %v44 = vrot.slane %v14, %v43
  %v45 = vlaneseq
  %v46 = vshrl.u32 %v45, 7
  %v47 = vsub.s32 3, %v46
  %v48 = vrot.slane %v15, %v47
  %v49 = vmul.f32 %v27, %v44
  %v50 = vmul.f32 %v27, %v48
  %v51 = vadd.f32 %v22, %v49
  %v52 = vadd.f32 %v22, %v50
  %53 = vset.pattern.permute.xlu0 9
  %54 = vperm.xlu0 %53, %v17
  %v55 = vpop.permute.xlu0 %54
  %v57 = vlaneseq
  %v58 = vshrl.u32 %v57, 7
  %v59 = vsub.s32 1, %v58
  %v60 = vrot.slane %v14, %v59
  %v61 = vlaneseq
  %v62 = vshrl.u32 %v61, 7
  %v63 = vsub.s32 1, %v62
  %v64 = vrot.slane %v15, %v63
  %v65 = vmul.f32 %v55, %v60
  %v66 = vmul.f32 %v55, %v64
  %v67 = vadd.f32 %v39, %v65
  %v68 = vadd.f32 %v40, %v66
  %v69 = vlaneseq
  %v70 = vshrl.u32 %v69, 7
  %v71 = vsub.s32 4, %v70
  %v72 = vrot.slane %v14, %v71
  %v73 = vlaneseq
  %v74 = vshrl.u32 %v73, 7
  %v75 = vsub.s32 4, %v74
  %v76 = vrot.slane %v15, %v75
  %v77 = vmul.f32 %v55, %v72
  %v78 = vmul.f32 %v55, %v76
  %v79 = vadd.f32 %v51, %v77
  %v80 = vadd.f32 %v52, %v78
  %81 = vset.pattern.permute.xlu0 18
  %82 = vperm.xlu0 %81, %v17
  %v83 = vpop.permute.xlu0 %82
  %v85 = vlaneseq
  %v86 = vshrl.u32 %v85, 7
  %v87 = vsub.s32 2, %v86
  %v88 = vrot.slane %v14, %v87
  %v89 = vlaneseq
  %v90 = vshrl.u32 %v89, 7
  %v91 = vsub.s32 2, %v90
  %v92 = vrot.slane %v15, %v91
  %v93 = vmul.f32 %v83, %v88
  %v94 = vmul.f32 %v83, %v92
  %v95 = vadd.f32 %v67, %v93
  %v96 = vadd.f32 %v68, %v94
  %v97 = vlaneseq
  %v98 = vshrl.u32 %v97, 7
  %v99 = vsub.s32 5, %v98
  %v100 = vrot.slane %v14, %v99
  %v101 = vlaneseq
  %v102 = vshrl.u32 %v101, 7
  %v103 = vsub.s32 5, %v102
  %v104 = vrot.slane %v15, %v103
  %v105 = vmul.f32 %v83, %v100
  %v106 = vmul.f32 %v83, %v104
  %v107 = vadd.f32 %v79, %v105
  %v108 = vadd.f32 %v80, %v106
  %109 = vset.pattern.permute.xlu0 1
  %110 = vperm.xlu0 %109, %v17
  %v111 = vpop.permute.xlu0 %110
  %v113 = vlaneseq
  %v114 = vshrl.u32 %v113, 7
  %v115 = vsub.s32 0, %v114
  %v116 = vrot.slane %v16, %v115
  %v117 = vmul.f32 %v111, %v32
  %v118 = vmul.f32 %v111, %v36
  %v119 = vmul.f32 %v111, %v116
  %123 = vrot.lane.b32.xlu0 %v117, 127
  %v124 = vpop.permute.xlu0 %123
  %125 = vrot.lane.b32.xlu0 %v118, 127
  %v126 = vpop.permute.xlu0 %125
  %127 = vrot.lane.b32.xlu0 %v119, 127
  %v128 = vpop.permute.xlu0 %127
  %vm129 = vcmask 1039360
  %v130 = vsel %vm129, %v124, %v126
  %v131 = vsel %vm129, %v126, %v128
  %v134 = vadd.f32 %v95, %v130
  %v135 = vadd.f32 %v96, %v131
  %v136 = vlaneseq
  %v137 = vshrl.u32 %v136, 7
  %v138 = vsub.s32 3, %v137
  %v139 = vrot.slane %v16, %v138
  %v140 = vmul.f32 %v111, %v44
  %v141 = vmul.f32 %v111, %v48
  %v142 = vmul.f32 %v111, %v139
  %146 = vrot.lane.b32.xlu0 %v140, 127
  %v147 = vpop.permute.xlu0 %146
  %148 = vrot.lane.b32.xlu0 %v141, 127
  %v149 = vpop.permute.xlu0 %148
  %150 = vrot.lane.b32.xlu0 %v142, 127
  %v151 = vpop.permute.xlu0 %150
  %v152 = vsel %vm129, %v147, %v149
  %v153 = vsel %vm129, %v149, %v151
  %v156 = vadd.f32 %v107, %v152
  %v157 = vadd.f32 %v108, %v153
  %158 = vset.pattern.permute.xlu0 10
  %159 = vperm.xlu0 %158, %v17
  %v160 = vpop.permute.xlu0 %159
  %v162 = vlaneseq
  %v163 = vshrl.u32 %v162, 7
  %v164 = vsub.s32 1, %v163
  %v165 = vrot.slane %v16, %v164
  %v166 = vmul.f32 %v160, %v60
  %v167 = vmul.f32 %v160, %v64
  %v168 = vmul.f32 %v160, %v165
  %172 = vrot.lane.b32.xlu0 %v166, 127
  %v173 = vpop.permute.xlu0 %172
  %174 = vrot.lane.b32.xlu0 %v167, 127
  %v175 = vpop.permute.xlu0 %174
  %176 = vrot.lane.b32.xlu0 %v168, 127
  %v177 = vpop.permute.xlu0 %176
  %v178 = vsel %vm129, %v173, %v175
  %v179 = vsel %vm129, %v175, %v177
  %v182 = vadd.f32 %v134, %v178
  %v183 = vadd.f32 %v135, %v179
  %v184 = vlaneseq
  %v185 = vshrl.u32 %v184, 7
  %v186 = vsub.s32 4, %v185
  %v187 = vrot.slane %v16, %v186
  %v188 = vmul.f32 %v160, %v72
  %v189 = vmul.f32 %v160, %v76
  %v190 = vmul.f32 %v160, %v187
  %194 = vrot.lane.b32.xlu0 %v188, 127
  %v195 = vpop.permute.xlu0 %194
  %196 = vrot.lane.b32.xlu0 %v189, 127
  %v197 = vpop.permute.xlu0 %196
  %198 = vrot.lane.b32.xlu0 %v190, 127
  %v199 = vpop.permute.xlu0 %198
  %v200 = vsel %vm129, %v195, %v197
  %v201 = vsel %vm129, %v197, %v199
  %v204 = vadd.f32 %v156, %v200
  %v205 = vadd.f32 %v157, %v201
  %206 = vset.pattern.permute.xlu0 19
  %207 = vperm.xlu0 %206, %v17
  %v208 = vpop.permute.xlu0 %207
  %v210 = vlaneseq
  %v211 = vshrl.u32 %v210, 7
  %v212 = vsub.s32 2, %v211
  %v213 = vrot.slane %v16, %v212
  %v214 = vmul.f32 %v208, %v88
  %v215 = vmul.f32 %v208, %v92
  %v216 = vmul.f32 %v208, %v213
  %220 = vrot.lane.b32.xlu0 %v214, 127
  %v221 = vpop.permute.xlu0 %220
  %222 = vrot.lane.b32.xlu0 %v215, 127
  %v223 = vpop.permute.xlu0 %222
  %224 = vrot.lane.b32.xlu0 %v216, 127
  %v225 = vpop.permute.xlu0 %224
  %v226 = vsel %vm129, %v221, %v223
  %v227 = vsel %vm129, %v223, %v225
  %v230 = vadd.f32 %v182, %v226
  %v231 = vadd.f32 %v183, %v227
  %v232 = vlaneseq
  %v233 = vshrl.u32 %v232, 7
  %v234 = vsub.s32 5, %v233
  %v235 = vrot.slane %v16, %v234
  %v236 = vmul.f32 %v208, %v100
  %v237 = vmul.f32 %v208, %v104
  %v238 = vmul.f32 %v208, %v235
  %242 = vrot.lane.b32.xlu0 %v236, 127
  %v243 = vpop.permute.xlu0 %242
  %244 = vrot.lane.b32.xlu0 %v237, 127
  %v245 = vpop.permute.xlu0 %244
  %246 = vrot.lane.b32.xlu0 %v238, 127
  %v247 = vpop.permute.xlu0 %246
  %v248 = vsel %vm129, %v243, %v245
  %v249 = vsel %vm129, %v245, %v247
  %v252 = vadd.f32 %v204, %v248
  %v253 = vadd.f32 %v205, %v249
  %254 = vset.pattern.permute.xlu0 2
  %255 = vperm.xlu0 %254, %v17
  %v256 = vpop.permute.xlu0 %255
  %v258 = vmul.f32 %v256, %v32
  %v259 = vmul.f32 %v256, %v36
  %v260 = vmul.f32 %v256, %v116
  %264 = vrot.lane.b32.xlu0 %v258, 126
  %v265 = vpop.permute.xlu0 %264
  %266 = vrot.lane.b32.xlu0 %v259, 126
  %v267 = vpop.permute.xlu0 %266
  %268 = vrot.lane.b32.xlu0 %v260, 126
  %v269 = vpop.permute.xlu0 %268
  %vm270 = vcmask 1031168
  %v271 = vsel %vm270, %v265, %v267
  %v272 = vsel %vm270, %v267, %v269
  %v275 = vadd.f32 %v230, %v271
  %v276 = vadd.f32 %v231, %v272
  %v277 = vmul.f32 %v256, %v44
  %v278 = vmul.f32 %v256, %v48
  %v279 = vmul.f32 %v256, %v139
  %283 = vrot.lane.b32.xlu0 %v277, 126
  %v284 = vpop.permute.xlu0 %283
  %285 = vrot.lane.b32.xlu0 %v278, 126
  %v286 = vpop.permute.xlu0 %285
  %287 = vrot.lane.b32.xlu0 %v279, 126
  %v288 = vpop.permute.xlu0 %287
  %v289 = vsel %vm270, %v284, %v286
  %v290 = vsel %vm270, %v286, %v288
  %v293 = vadd.f32 %v252, %v289
  %v294 = vadd.f32 %v253, %v290
  %295 = vset.pattern.permute.xlu0 11
  %296 = vperm.xlu0 %295, %v17
  %v297 = vpop.permute.xlu0 %296
  %v299 = vmul.f32 %v297, %v60
  %v300 = vmul.f32 %v297, %v64
  %v301 = vmul.f32 %v297, %v165
  %305 = vrot.lane.b32.xlu0 %v299, 126
  %v306 = vpop.permute.xlu0 %305
  %307 = vrot.lane.b32.xlu0 %v300, 126
  %v308 = vpop.permute.xlu0 %307
  %309 = vrot.lane.b32.xlu0 %v301, 126
  %v310 = vpop.permute.xlu0 %309
  %v311 = vsel %vm270, %v306, %v308
  %v312 = vsel %vm270, %v308, %v310
  %v315 = vadd.f32 %v275, %v311
  %v316 = vadd.f32 %v276, %v312
  %v317 = vmul.f32 %v297, %v72
  %v318 = vmul.f32 %v297, %v76
  %v319 = vmul.f32 %v297, %v187
  %323 = vrot.lane.b32.xlu0 %v317, 126
  %v324 = vpop.permute.xlu0 %323
  %325 = vrot.lane.b32.xlu0 %v318, 126
  %v326 = vpop.permute.xlu0 %325
  %327 = vrot.lane.b32.xlu0 %v319, 126
  %v328 = vpop.permute.xlu0 %327
  %v329 = vsel %vm270, %v324, %v326
  %v330 = vsel %vm270, %v326, %v328
  %v333 = vadd.f32 %v293, %v329
  %v334 = vadd.f32 %v294, %v330
  %335 = vset.pattern.permute.xlu0 20
  %336 = vperm.xlu0 %335, %v17
  %v337 = vpop.permute.xlu0 %336
  %v339 = vmul.f32 %v337, %v88
  %v340 = vmul.f32 %v337, %v92
  %v341 = vmul.f32 %v337, %v213
  %345 = vrot.lane.b32.xlu0 %v339, 126
  %v346 = vpop.permute.xlu0 %345
  %347 = vrot.lane.b32.xlu0 %v340, 126
  %v348 = vpop.permute.xlu0 %347
  %349 = vrot.lane.b32.xlu0 %v341, 126
  %v350 = vpop.permute.xlu0 %349
  %v351 = vsel %vm270, %v346, %v348
  %v352 = vsel %vm270, %v348, %v350
  %v355 = vadd.f32 %v315, %v351
  %v356 = vadd.f32 %v316, %v352
  %v357 = vmul.f32 %v337, %v100
  %v358 = vmul.f32 %v337, %v104
  %v359 = vmul.f32 %v337, %v235
  %363 = vrot.lane.b32.xlu0 %v357, 126
  %v364 = vpop.permute.xlu0 %363
  %365 = vrot.lane.b32.xlu0 %v358, 126
  %v366 = vpop.permute.xlu0 %365
  %367 = vrot.lane.b32.xlu0 %v359, 126
  %v368 = vpop.permute.xlu0 %367
  %v369 = vsel %vm270, %v364, %v366
  %v370 = vsel %vm270, %v366, %v368
  %v373 = vadd.f32 %v333, %v369
  %v374 = vadd.f32 %v334, %v370
  %375 = vset.pattern.permute.xlu0 3
  %376 = vperm.xlu0 %375, %v17
  %v377 = vpop.permute.xlu0 %376
  %v379 = vmul.f32 %v377, %v32
  %v380 = vmul.f32 %v377, %v36
  %v381 = vmul.f32 %v377, %v116
  %385 = vrot.lane.b32.xlu0 %v379, 112
  %v386 = vpop.permute.xlu0 %385
  %387 = vrot.lane.b32.xlu0 %v380, 112
  %v388 = vpop.permute.xlu0 %387
  %389 = vrot.lane.b32.xlu0 %v381, 112
  %v390 = vpop.permute.xlu0 %389
  %vm391 = vcmask 916480
  %v392 = vsel %vm391, %v386, %v388
  %v393 = vsel %vm391, %v388, %v390
  %v396 = vadd.f32 %v355, %v392
  %v397 = vadd.f32 %v356, %v393
  %v398 = vmul.f32 %v377, %v44
  %v399 = vmul.f32 %v377, %v48
  %v400 = vmul.f32 %v377, %v139
  %404 = vrot.lane.b32.xlu0 %v398, 112
  %v405 = vpop.permute.xlu0 %404
  %406 = vrot.lane.b32.xlu0 %v399, 112
  %v407 = vpop.permute.xlu0 %406
  %408 = vrot.lane.b32.xlu0 %v400, 112
  %v409 = vpop.permute.xlu0 %408
  %v410 = vsel %vm391, %v405, %v407
  %v411 = vsel %vm391, %v407, %v409
  %v414 = vadd.f32 %v373, %v410
  %v415 = vadd.f32 %v374, %v411
  %416 = vset.pattern.permute.xlu0 12
  %417 = vperm.xlu0 %416, %v17
  %v418 = vpop.permute.xlu0 %417
  %v420 = vmul.f32 %v418, %v60
  %v421 = vmul.f32 %v418, %v64
  %v422 = vmul.f32 %v418, %v165
  %426 = vrot.lane.b32.xlu0 %v420, 112
  %v427 = vpop.permute.xlu0 %426
  %428 = vrot.lane.b32.xlu0 %v421, 112
  %v429 = vpop.permute.xlu0 %428
  %430 = vrot.lane.b32.xlu0 %v422, 112
  %v431 = vpop.permute.xlu0 %430
  %v432 = vsel %vm391, %v427, %v429
  %v433 = vsel %vm391, %v429, %v431
  %v436 = vadd.f32 %v396, %v432
  %v437 = vadd.f32 %v397, %v433
  %v438 = vmul.f32 %v418, %v72
  %v439 = vmul.f32 %v418, %v76
  %v440 = vmul.f32 %v418, %v187
  %444 = vrot.lane.b32.xlu0 %v438, 112
  %v445 = vpop.permute.xlu0 %444
  %446 = vrot.lane.b32.xlu0 %v439, 112
  %v447 = vpop.permute.xlu0 %446
  %448 = vrot.lane.b32.xlu0 %v440, 112
  %v449 = vpop.permute.xlu0 %448
  %v450 = vsel %vm391, %v445, %v447
  %v451 = vsel %vm391, %v447, %v449
  %v454 = vadd.f32 %v414, %v450
  %v455 = vadd.f32 %v415, %v451
  %456 = vset.pattern.permute.xlu0 21
  %457 = vperm.xlu0 %456, %v17
  %v458 = vpop.permute.xlu0 %457
  %v460 = vmul.f32 %v458, %v88
  %v461 = vmul.f32 %v458, %v92
  %v462 = vmul.f32 %v458, %v213
  %466 = vrot.lane.b32.xlu0 %v460, 112
  %v467 = vpop.permute.xlu0 %466
  %468 = vrot.lane.b32.xlu0 %v461, 112
  %v469 = vpop.permute.xlu0 %468
  %470 = vrot.lane.b32.xlu0 %v462, 112
  %v471 = vpop.permute.xlu0 %470
  %v472 = vsel %vm391, %v467, %v469
  %v473 = vsel %vm391, %v469, %v471
  %v476 = vadd.f32 %v436, %v472
  %v477 = vadd.f32 %v437, %v473
  %v478 = vmul.f32 %v458, %v100
  %v479 = vmul.f32 %v458, %v104
  %v480 = vmul.f32 %v458, %v235
  %484 = vrot.lane.b32.xlu0 %v478, 112
  %v485 = vpop.permute.xlu0 %484
  %486 = vrot.lane.b32.xlu0 %v479, 112
  %v487 = vpop.permute.xlu0 %486
  %488 = vrot.lane.b32.xlu0 %v480, 112
  %v489 = vpop.permute.xlu0 %488
  %v490 = vsel %vm391, %v485, %v487
  %v491 = vsel %vm391, %v487, %v489
  %v494 = vadd.f32 %v454, %v490
  %v495 = vadd.f32 %v455, %v491
  %496 = vset.pattern.permute.xlu0 4
  %497 = vperm.xlu0 %496, %v17
  %v498 = vpop.permute.xlu0 %497
  %v500 = vmul.f32 %v498, %v32
  %v501 = vmul.f32 %v498, %v36
  %v502 = vmul.f32 %v498, %v116
  %506 = vrot.lane.b32.xlu0 %v500, 111
  %v507 = vpop.permute.xlu0 %506
  %508 = vrot.lane.b32.xlu0 %v501, 111
  %v509 = vpop.permute.xlu0 %508
  %510 = vrot.lane.b32.xlu0 %v502, 111
  %v511 = vpop.permute.xlu0 %510
  %vm512 = vcmask 908288
  %v513 = vsel %vm512, %v507, %v509
  %v514 = vsel %vm512, %v509, %v511
  %v517 = vadd.f32 %v476, %v513
  %v518 = vadd.f32 %v477, %v514
  %v519 = vmul.f32 %v498, %v44
  %v520 = vmul.f32 %v498, %v48
  %v521 = vmul.f32 %v498, %v139
  %525 = vrot.lane.b32.xlu0 %v519, 111
  %v526 = vpop.permute.xlu0 %525
  %527 = vrot.lane.b32.xlu0 %v520, 111
  %v528 = vpop.permute.xlu0 %527
  %529 = vrot.lane.b32.xlu0 %v521, 111
  %v530 = vpop.permute.xlu0 %529
  %v531 = vsel %vm512, %v526, %v528
  %v532 = vsel %vm512, %v528, %v530
  %v535 = vadd.f32 %v494, %v531
  %v536 = vadd.f32 %v495, %v532
  %537 = vset.pattern.permute.xlu0 13
  %538 = vperm.xlu0 %537, %v17
  %v539 = vpop.permute.xlu0 %538
  %v541 = vmul.f32 %v539, %v60
  %v542 = vmul.f32 %v539, %v64
  %v543 = vmul.f32 %v539, %v165
  %547 = vrot.lane.b32.xlu0 %v541, 111
  %v548 = vpop.permute.xlu0 %547
  %549 = vrot.lane.b32.xlu0 %v542, 111
  %v550 = vpop.permute.xlu0 %549
  %551 = vrot.lane.b32.xlu0 %v543, 111
  %v552 = vpop.permute.xlu0 %551
  %v553 = vsel %vm512, %v548, %v550
  %v554 = vsel %vm512, %v550, %v552
  %v557 = vadd.f32 %v517, %v553
  %v558 = vadd.f32 %v518, %v554
  %v559 = vmul.f32 %v539, %v72
  %v560 = vmul.f32 %v539, %v76
  %v561 = vmul.f32 %v539, %v187
  %565 = vrot.lane.b32.xlu0 %v559, 111
  %v566 = vpop.permute.xlu0 %565
  %567 = vrot.lane.b32.xlu0 %v560, 111
  %v568 = vpop.permute.xlu0 %567
  %569 = vrot.lane.b32.xlu0 %v561, 111
  %v570 = vpop.permute.xlu0 %569
  %v571 = vsel %vm512, %v566, %v568
  %v572 = vsel %vm512, %v568, %v570
  %v575 = vadd.f32 %v535, %v571
  %v576 = vadd.f32 %v536, %v572
  %577 = vset.pattern.permute.xlu0 22
  %578 = vperm.xlu0 %577, %v17
  %v579 = vpop.permute.xlu0 %578
  %v581 = vmul.f32 %v579, %v88
  %v582 = vmul.f32 %v579, %v92
  %v583 = vmul.f32 %v579, %v213
  %587 = vrot.lane.b32.xlu0 %v581, 111
  %v588 = vpop.permute.xlu0 %587
  %589 = vrot.lane.b32.xlu0 %v582, 111
  %v590 = vpop.permute.xlu0 %589
  %591 = vrot.lane.b32.xlu0 %v583, 111
  %v592 = vpop.permute.xlu0 %591
  %v593 = vsel %vm512, %v588, %v590
  %v594 = vsel %vm512, %v590, %v592
  %v597 = vadd.f32 %v557, %v593
  %v598 = vadd.f32 %v558, %v594
  %v599 = vmul.f32 %v579, %v100
  %v600 = vmul.f32 %v579, %v104
  %v601 = vmul.f32 %v579, %v235
  %605 = vrot.lane.b32.xlu0 %v599, 111
  %v606 = vpop.permute.xlu0 %605
  %607 = vrot.lane.b32.xlu0 %v600, 111
  %v608 = vpop.permute.xlu0 %607
  %609 = vrot.lane.b32.xlu0 %v601, 111
  %v610 = vpop.permute.xlu0 %609
  %v611 = vsel %vm512, %v606, %v608
  %v612 = vsel %vm512, %v608, %v610
  %v615 = vadd.f32 %v575, %v611
  %v616 = vadd.f32 %v576, %v612
  %617 = vset.pattern.permute.xlu0 5
  %618 = vperm.xlu0 %617, %v17
  %v619 = vpop.permute.xlu0 %618
  %v621 = vmul.f32 %v619, %v32
  %v622 = vmul.f32 %v619, %v36
  %v623 = vmul.f32 %v619, %v116
  %627 = vrot.lane.b32.xlu0 %v621, 110
  %v628 = vpop.permute.xlu0 %627
  %629 = vrot.lane.b32.xlu0 %v622, 110
  %v630 = vpop.permute.xlu0 %629
  %631 = vrot.lane.b32.xlu0 %v623, 110
  %v632 = vpop.permute.xlu0 %631
  %vm633 = vcmask 900096
  %v634 = vsel %vm633, %v628, %v630
  %v635 = vsel %vm633, %v630, %v632
  %v638 = vadd.f32 %v597, %v634
  %v639 = vadd.f32 %v598, %v635
  %v640 = vmul.f32 %v619, %v44
  %v641 = vmul.f32 %v619, %v48
  %v642 = vmul.f32 %v619, %v139
  %646 = vrot.lane.b32.xlu0 %v640, 110
  %v647 = vpop.permute.xlu0 %646
  %648 = vrot.lane.b32.xlu0 %v641, 110
  %v649 = vpop.permute.xlu0 %648
  %650 = vrot.lane.b32.xlu0 %v642, 110
  %v651 = vpop.permute.xlu0 %650
  %v652 = vsel %vm633, %v647, %v649
  %v653 = vsel %vm633, %v649, %v651
  %v656 = vadd.f32 %v615, %v652
  %v657 = vadd.f32 %v616, %v653
  %658 = vset.pattern.permute.xlu0 14
  %659 = vperm.xlu0 %658, %v17
  %v660 = vpop.permute.xlu0 %659
  %v662 = vmul.f32 %v660, %v60
  %v663 = vmul.f32 %v660, %v64
  %v664 = vmul.f32 %v660, %v165
  %668 = vrot.lane.b32.xlu0 %v662, 110
  %v669 = vpop.permute.xlu0 %668
  %670 = vrot.lane.b32.xlu0 %v663, 110
  %v671 = vpop.permute.xlu0 %670
  %672 = vrot.lane.b32.xlu0 %v664, 110
  %v673 = vpop.permute.xlu0 %672
  %v674 = vsel %vm633, %v669, %v671
  %v675 = vsel %vm633, %v671, %v673
  %v678 = vadd.f32 %v638, %v674
  %v679 = vadd.f32 %v639, %v675
  %v680 = vmul.f32 %v660, %v72
  %v681 = vmul.f32 %v660, %v76
  %v682 = vmul.f32 %v660, %v187
  %686 = vrot.lane.b32.xlu0 %v680, 110
  %v687 = vpop.permute.xlu0 %686
  %688 = vrot.lane.b32.xlu0 %v681, 110
  %v689 = vpop.permute.xlu0 %688
  %690 = vrot.lane.b32.xlu0 %v682, 110
  %v691 = vpop.permute.xlu0 %690
  %v692 = vsel %vm633, %v687, %v689
  %v693 = vsel %vm633, %v689, %v691
  %v696 = vadd.f32 %v656, %v692
  %v697 = vadd.f32 %v657, %v693
  %698 = vset.pattern.permute.xlu0 23
  %699 = vperm.xlu0 %698, %v17
  %v700 = vpop.permute.xlu0 %699
  %v702 = vmul.f32 %v700, %v88
  %v703 = vmul.f32 %v700, %v92
  %v704 = vmul.f32 %v700, %v213
  %708 = vrot.lane.b32.xlu0 %v702, 110
  %v709 = vpop.permute.xlu0 %708
  %710 = vrot.lane.b32.xlu0 %v703, 110
  %v711 = vpop.permute.xlu0 %710
  %712 = vrot.lane.b32.xlu0 %v704, 110
  %v713 = vpop.permute.xlu0 %712
  %v714 = vsel %vm633, %v709, %v711
  %v715 = vsel %vm633, %v711, %v713
  %v718 = vadd.f32 %v678, %v714
  %v719 = vadd.f32 %v679, %v715
  %v720 = vmul.f32 %v700, %v100
  %v721 = vmul.f32 %v700, %v104
  %v722 = vmul.f32 %v700, %v235
  %726 = vrot.lane.b32.xlu0 %v720, 110
  %v727 = vpop.permute.xlu0 %726
  %728 = vrot.lane.b32.xlu0 %v721, 110
  %v729 = vpop.permute.xlu0 %728
  %730 = vrot.lane.b32.xlu0 %v722, 110
  %v731 = vpop.permute.xlu0 %730
  %v732 = vsel %vm633, %v727, %v729
  %v733 = vsel %vm633, %v729, %v731
  %v736 = vadd.f32 %v696, %v732
  %v737 = vadd.f32 %v697, %v733
  %738 = vset.pattern.permute.xlu0 6
  %739 = vperm.xlu0 %738, %v17
  %v740 = vpop.permute.xlu0 %739
  %v742 = vmul.f32 %v740, %v32
  %v743 = vmul.f32 %v740, %v36
  %v744 = vmul.f32 %v740, %v116
  %748 = vrot.lane.b32.xlu0 %v742, 96
  %v749 = vpop.permute.xlu0 %748
  %750 = vrot.lane.b32.xlu0 %v743, 96
  %v751 = vpop.permute.xlu0 %750
  %752 = vrot.lane.b32.xlu0 %v744, 96
  %v753 = vpop.permute.xlu0 %752
  %vm754 = vcmask 785408
  %v755 = vsel %vm754, %v749, %v751
  %v756 = vsel %vm754, %v751, %v753
  %v759 = vadd.f32 %v718, %v755
  %v760 = vadd.f32 %v719, %v756
  %v761 = vmul.f32 %v740, %v44
  %v762 = vmul.f32 %v740, %v48
  %v763 = vmul.f32 %v740, %v139
  %767 = vrot.lane.b32.xlu0 %v761, 96
  %v768 = vpop.permute.xlu0 %767
  %769 = vrot.lane.b32.xlu0 %v762, 96
  %v770 = vpop.permute.xlu0 %769
  %771 = vrot.lane.b32.xlu0 %v763, 96
  %v772 = vpop.permute.xlu0 %771
  %v773 = vsel %vm754, %v768, %v770
  %v774 = vsel %vm754, %v770, %v772
  %v777 = vadd.f32 %v736, %v773
  %v778 = vadd.f32 %v737, %v774
  %779 = vset.pattern.permute.xlu0 15
  %780 = vperm.xlu0 %779, %v17
  %v781 = vpop.permute.xlu0 %780
  %v783 = vmul.f32 %v781, %v60
  %v784 = vmul.f32 %v781, %v64
  %v785 = vmul.f32 %v781, %v165
  %789 = vrot.lane.b32.xlu0 %v783, 96
  %v790 = vpop.permute.xlu0 %789
  %791 = vrot.lane.b32.xlu0 %v784, 96
  %v792 = vpop.permute.xlu0 %791
  %793 = vrot.lane.b32.xlu0 %v785, 96
  %v794 = vpop.permute.xlu0 %793
  %v795 = vsel %vm754, %v790, %v792
  %v796 = vsel %vm754, %v792, %v794
  %v799 = vadd.f32 %v759, %v795
  %v800 = vadd.f32 %v760, %v796
  %v801 = vmul.f32 %v781, %v72
  %v802 = vmul.f32 %v781, %v76
  %v803 = vmul.f32 %v781, %v187
  %807 = vrot.lane.b32.xlu0 %v801, 96
  %v808 = vpop.permute.xlu0 %807
  %809 = vrot.lane.b32.xlu0 %v802, 96
  %v810 = vpop.permute.xlu0 %809
  %811 = vrot.lane.b32.xlu0 %v803, 96
  %v812 = vpop.permute.xlu0 %811
  %v813 = vsel %vm754, %v808, %v810
  %v814 = vsel %vm754, %v810, %v812
  %v817 = vadd.f32 %v777, %v813
  %v818 = vadd.f32 %v778, %v814
  %819 = vset.pattern.permute.xlu0 24
  %820 = vperm.xlu0 %819, %v17
  %v821 = vpop.permute.xlu0 %820
  %v823 = vmul.f32 %v821, %v88
  %v824 = vmul.f32 %v821, %v92
  %v825 = vmul.f32 %v821, %v213
  %829 = vrot.lane.b32.xlu0 %v823, 96
  %v830 = vpop.permute.xlu0 %829
  %831 = vrot.lane.b32.xlu0 %v824, 96
  %v832 = vpop.permute.xlu0 %831
  %833 = vrot.lane.b32.xlu0 %v825, 96
  %v834 = vpop.permute.xlu0 %833
  %v835 = vsel %vm754, %v830, %v832
  %v836 = vsel %vm754, %v832, %v834
  %v839 = vadd.f32 %v799, %v835
  %v840 = vadd.f32 %v800, %v836
  %v841 = vmul.f32 %v821, %v100
  %v842 = vmul.f32 %v821, %v104
  %v843 = vmul.f32 %v821, %v235
  %847 = vrot.lane.b32.xlu0 %v841, 96
  %v848 = vpop.permute.xlu0 %847
  %849 = vrot.lane.b32.xlu0 %v842, 96
  %v850 = vpop.permute.xlu0 %849
  %851 = vrot.lane.b32.xlu0 %v843, 96
  %v852 = vpop.permute.xlu0 %851
  %v853 = vsel %vm754, %v848, %v850
  %v854 = vsel %vm754, %v850, %v852
  %v857 = vadd.f32 %v817, %v853
  %v858 = vadd.f32 %v818, %v854
  %859 = vset.pattern.permute.xlu0 7
  %860 = vperm.xlu0 %859, %v17
  %v861 = vpop.permute.xlu0 %860
  %v863 = vmul.f32 %v861, %v32
  %v864 = vmul.f32 %v861, %v36
  %v865 = vmul.f32 %v861, %v116
  %869 = vrot.lane.b32.xlu0 %v863, 95
  %v870 = vpop.permute.xlu0 %869
  %871 = vrot.lane.b32.xlu0 %v864, 95
  %v872 = vpop.permute.xlu0 %871
  %873 = vrot.lane.b32.xlu0 %v865, 95
  %v874 = vpop.permute.xlu0 %873
  %vm875 = vcmask 777216
  %v876 = vsel %vm875, %v870, %v872
  %v877 = vsel %vm875, %v872, %v874
  %v880 = vadd.f32 %v839, %v876
  %v881 = vadd.f32 %v840, %v877
  %v882 = vmul.f32 %v861, %v44
  %v883 = vmul.f32 %v861, %v48
  %v884 = vmul.f32 %v861, %v139
  %888 = vrot.lane.b32.xlu0 %v882, 95
  %v889 = vpop.permute.xlu0 %888
  %890 = vrot.lane.b32.xlu0 %v883, 95
  %v891 = vpop.permute.xlu0 %890
  %892 = vrot.lane.b32.xlu0 %v884, 95
  %v893 = vpop.permute.xlu0 %892
  %v894 = vsel %vm875, %v889, %v891
  %v895 = vsel %vm875, %v891, %v893
  %v898 = vadd.f32 %v857, %v894
  %v899 = vadd.f32 %v858, %v895
  %900 = vset.pattern.permute.xlu0 16
  %901 = vperm.xlu0 %900, %v17
  %v902 = vpop.permute.xlu0 %901
  %v904 = vmul.f32 %v902, %v60
  %v905 = vmul.f32 %v902, %v64
  %v906 = vmul.f32 %v902, %v165
  %910 = vrot.lane.b32.xlu0 %v904, 95
  %v911 = vpop.permute.xlu0 %910
  %912 = vrot.lane.b32.xlu0 %v905, 95
  %v913 = vpop.permute.xlu0 %912
  %914 = vrot.lane.b32.xlu0 %v906, 95
  %v915 = vpop.permute.xlu0 %914
  %v916 = vsel %vm875, %v911, %v913
  %v917 = vsel %vm875, %v913, %v915
  %v920 = vadd.f32 %v880, %v916
  %v921 = vadd.f32 %v881, %v917
  %v922 = vmul.f32 %v902, %v72
  %v923 = vmul.f32 %v902, %v76
  %v924 = vmul.f32 %v902, %v187
  %928 = vrot.lane.b32.xlu0 %v922, 95
  %v929 = vpop.permute.xlu0 %928
  %930 = vrot.lane.b32.xlu0 %v923, 95
  %v931 = vpop.permute.xlu0 %930
  %932 = vrot.lane.b32.xlu0 %v924, 95
  %v933 = vpop.permute.xlu0 %932
  %v934 = vsel %vm875, %v929, %v931
  %v935 = vsel %vm875, %v931, %v933
  %v938 = vadd.f32 %v898, %v934
  %v939 = vadd.f32 %v899, %v935
  %940 = vset.pattern.permute.xlu0 25
  %941 = vperm.xlu0 %940, %v17
  %v942 = vpop.permute.xlu0 %941
  %v944 = vmul.f32 %v942, %v88
  %v945 = vmul.f32 %v942, %v92
  %v946 = vmul.f32 %v942, %v213
  %950 = vrot.lane.b32.xlu0 %v944, 95
  %v951 = vpop.permute.xlu0 %950
  %952 = vrot.lane.b32.xlu0 %v945, 95
  %v953 = vpop.permute.xlu0 %952
  %954 = vrot.lane.b32.xlu0 %v946, 95
  %v955 = vpop.permute.xlu0 %954
  %v956 = vsel %vm875, %v951, %v953
  %v957 = vsel %vm875, %v953, %v955
  %v960 = vadd.f32 %v920, %v956
  %v961 = vadd.f32 %v921, %v957
  %v962 = vmul.f32 %v942, %v100
  %v963 = vmul.f32 %v942, %v104
  %v964 = vmul.f32 %v942, %v235
  %968 = vrot.lane.b32.xlu0 %v962, 95
  %v969 = vpop.permute.xlu0 %968
  %970 = vrot.lane.b32.xlu0 %v963, 95
  %v971 = vpop.permute.xlu0 %970
  %972 = vrot.lane.b32.xlu0 %v964, 95
  %v973 = vpop.permute.xlu0 %972
  %v974 = vsel %vm875, %v969, %v971
  %v975 = vsel %vm875, %v971, %v973
  %v978 = vadd.f32 %v938, %v974
  %v979 = vadd.f32 %v939, %v975
  %980 = vset.pattern.permute.xlu0 8
  %981 = vperm.xlu0 %980, %v17
  %v982 = vpop.permute.xlu0 %981
  %v984 = vmul.f32 %v982, %v32
  %v985 = vmul.f32 %v982, %v36
  %v986 = vmul.f32 %v982, %v116
  %990 = vrot.lane.b32.xlu0 %v984, 94
  %v991 = vpop.permute.xlu0 %990
  %992 = vrot.lane.b32.xlu0 %v985, 94
  %v993 = vpop.permute.xlu0 %992
  %994 = vrot.lane.b32.xlu0 %v986, 94
  %v995 = vpop.permute.xlu0 %994
  %vm996 = vcmask 769024
  %v997 = vsel %vm996, %v991, %v993
  %v998 = vsel %vm996, %v993, %v995
  %v1001 = vadd.f32 %v960, %v997
  %v1002 = vadd.f32 %v961, %v998
  %v1003 = vmul.f32 %v982, %v44
  %v1004 = vmul.f32 %v982, %v48
  %v1005 = vmul.f32 %v982, %v139
  %1009 = vrot.lane.b32.xlu0 %v1003, 94
  %v1010 = vpop.permute.xlu0 %1009
  %1011 = vrot.lane.b32.xlu0 %v1004, 94
  %v1012 = vpop.permute.xlu0 %1011
  %1013 = vrot.lane.b32.xlu0 %v1005, 94
  %v1014 = vpop.permute.xlu0 %1013
  %v1015 = vsel %vm996, %v1010, %v1012
  %v1016 = vsel %vm996, %v1012, %v1014
  %v1019 = vadd.f32 %v978, %v1015
  %v1020 = vadd.f32 %v979, %v1016
  %1021 = vset.pattern.permute.xlu0 17
  %1022 = vperm.xlu0 %1021, %v17
  %v1023 = vpop.permute.xlu0 %1022
  %v1025 = vmul.f32 %v1023, %v60
  %v1026 = vmul.f32 %v1023, %v64
  %v1027 = vmul.f32 %v1023, %v165
  %1031 = vrot.lane.b32.xlu0 %v1025, 94
  %v1032 = vpop.permute.xlu0 %1031
  %1033 = vrot.lane.b32.xlu0 %v1026, 94
  %v1034 = vpop.permute.xlu0 %1033
  %1035 = vrot.lane.b32.xlu0 %v1027, 94
  %v1036 = vpop.permute.xlu0 %1035
  %v1037 = vsel %vm996, %v1032, %v1034
  %v1038 = vsel %vm996, %v1034, %v1036
  %v1041 = vadd.f32 %v1001, %v1037
  %v1042 = vadd.f32 %v1002, %v1038
  %v1043 = vmul.f32 %v1023, %v72
  %v1044 = vmul.f32 %v1023, %v76
  %v1045 = vmul.f32 %v1023, %v187
  %1049 = vrot.lane.b32.xlu0 %v1043, 94
  %v1050 = vpop.permute.xlu0 %1049
  %1051 = vrot.lane.b32.xlu0 %v1044, 94
  %v1052 = vpop.permute.xlu0 %1051
  %1053 = vrot.lane.b32.xlu0 %v1045, 94
  %v1054 = vpop.permute.xlu0 %1053
  %v1055 = vsel %vm996, %v1050, %v1052
  %v1056 = vsel %vm996, %v1052, %v1054
  %v1059 = vadd.f32 %v1019, %v1055
  %v1060 = vadd.f32 %v1020, %v1056
  %1061 = vset.pattern.permute.xlu0 26
  %1062 = vperm.xlu0 %1061, %v17
  %v1063 = vpop.permute.xlu0 %1062
  %v1065 = vmul.f32 %v1063, %v88
  %v1066 = vmul.f32 %v1063, %v92
  %v1067 = vmul.f32 %v1063, %v213
  %1071 = vrot.lane.b32.xlu0 %v1065, 94
  %v1072 = vpop.permute.xlu0 %1071
  %1073 = vrot.lane.b32.xlu0 %v1066, 94
  %v1074 = vpop.permute.xlu0 %1073
  %1075 = vrot.lane.b32.xlu0 %v1067, 94
  %v1076 = vpop.permute.xlu0 %1075
  %v1077 = vsel %vm996, %v1072, %v1074
  %v1078 = vsel %vm996, %v1074, %v1076
  %v1081 = vadd.f32 %v1041, %v1077
  %v1082 = vadd.f32 %v1042, %v1078
  %v1083 = vmul.f32 %v1063, %v100
  %v1084 = vmul.f32 %v1063, %v104
  %v1085 = vmul.f32 %v1063, %v235
  %1089 = vrot.lane.b32.xlu0 %v1083, 94
  %v1090 = vpop.permute.xlu0 %1089
  %1091 = vrot.lane.b32.xlu0 %v1084, 94
  %v1092 = vpop.permute.xlu0 %1091
  %1093 = vrot.lane.b32.xlu0 %v1085, 94
  %v1094 = vpop.permute.xlu0 %1093
  %v1095 = vsel %vm996, %v1090, %v1092
  %v1096 = vsel %vm996, %v1092, %v1094
  %v1099 = vadd.f32 %v1059, %v1095
  %v1100 = vadd.f32 %v1060, %v1096
  %1101 = vst [vmem:[%s3] sm:$0xff] %v1081
  %1102 = vst [vmem:[%s3 + $0x8] sm:$0xff] %v1082
  %s1103 = scalar_lea.vmem %s3, 16
  %1104 = vst [vmem:[%s1103] sm:$0xff] %v1099
  %1105 = vst [vmem:[%s1103 + $0x8] sm:$0xff] %v1100
  // Predicated region
  $region14: #{tudui_forward.1} parent=0 // pred_check
    _
  $region15: #{tudui_forward.1} parent=0 // pred_check_branch
    %1107 = sbr.rel (0) target = $region17
  $region16: #{tudui_forward.1} parent=0 // pred_region
    _
  $region17: #{tudui_forward.1} parent=0 // pred_fallthru
    _
  // Predicated region
  $region18: #{tudui_forward.1} parent=0 // pred_check
    _
  $region19: #{tudui_forward.1} parent=0 // pred_check_branch
    %1109 = sbr.rel (0) target = $region21
  $region20: #{tudui_forward.1} parent=0 // pred_region
    _
  $region21: #{tudui_forward.1} parent=0 // pred_fallthru
    _

</llo_original>
